<compile_context>
chip_gen: v6e
topology: v6e:2x2x1
jax: 0.10.0
libtpu: 0.0.40
codegen_flags: <defaults>
</compile_context>

<pallas_src>
import functools
import math

import jax
import jax.numpy as jnp
from jax.experimental import pallas as pl
from jax.experimental.pallas import tpu as pltpu

HPARAMS = dict(
    note_model="attn", hidden_size=32, enc_layers=2, dec_layers=2,
    audio_num_mel_bins=80, dur_predictor_layers=2, dur_predictor_kernel=3,
    predictor_dropout=0.1, ffn_padding="SAME", predictor_grad=0.1,
    dur_scale="linear",
)

# Explicit scoped-VMEM budget: lifts the 16 MiB default on v5e, stays well
# inside v7x's 64 MiB physical VMEM.
_VMEM_LIMIT_BYTES = 32 * 1024 * 1024


def _full_spec(a):
    """BlockSpec covering the whole array (block index 0 on every axis)."""
    nd = a.ndim
    return pl.BlockSpec(a.shape, lambda *_, _nd=nd: (0,) * _nd)


def _round_up(x, m):
    return (x + m - 1) // m * m


# ---------------------------------------------------------------------------
# Pallas kernel 1 (fused): group_hidden_by_segs + expand_states +
#                          DurationPredictor + word-level duration scatter
# ---------------------------------------------------------------------------
def _dur_fused_kernel(ph_gid_ref, ph_h_ref, note_gid_ref, note_h_ref,
                      nonpad_ref, w0_ref, aff0_ref, w1_ref, aff1_ref,
                      wl_ref, bl_ref, durw_ref, *, t_note):
    # All tensors are batch-flattened: row = b * T + t (time on sublanes,
    # channels on lanes).  Word columns use global ids b * W + w (0 = padding).
    ph_gid = ph_gid_ref[...]                 # [1, Nph]   int32 (lane-major row)
    ph_h = ph_h_ref[...]                     # [Nph, H+1] bf16 (last col = ones)
    note_gid = note_gid_ref[...]             # [Nn, 1]    int32
    note_h = note_h_ref[...]                 # [Nn, H]    bf16 (note_enc + spk)
    nonpad = nonpad_ref[...]                 # [Nn, 1]    f32

    BW = durw_ref.shape[-1]
    Nn = note_h.shape[0]
    H = ph_h.shape[-1] - 1

    gid_col = jax.lax.broadcasted_iota(jnp.int32, (BW, 1), 0) + 1   # [BW, 1]
    gid_row = jax.lax.broadcasted_iota(jnp.int32, (1, BW), 1) + 1   # [1, BW]

    # --- group_hidden_by_segs: canonical [BW,Nph] x [Nph,H+1] pooling matmul --
    ph_onehot = (gid_col == ph_gid).astype(jnp.bfloat16)            # [BW, Nph]
    pooled = jnp.dot(ph_onehot, ph_h, preferred_element_type=jnp.float32)
    cnt = jnp.maximum(pooled[:, H:H + 1], 1.0)                      # [BW, 1]
    word_out = (pooled[:, :H] / cnt).astype(jnp.bfloat16)           # [BW, H]

    # --- expand_states(word_out, note2words) + duration-predictor input ------
    note_onehot = (note_gid == gid_row).astype(jnp.bfloat16)        # [Nn, BW]
    expanded = jnp.dot(note_onehot, word_out,
                       preferred_element_type=jnp.float32)          # [Nn, H]
    dur_inp = (note_h.astype(jnp.float32) + expanded) * nonpad      # [Nn, H] f32

    # --- per-sample conv boundary masks (in-kernel iota, no tpos DMA) --------
    row = jax.lax.broadcasted_iota(jnp.int32, (Nn, 1), 0)
    n_samples = Nn // t_note
    is_first = row == 0
    is_last = row == (t_note - 1)
    for b in range(1, n_samples):                     # static, tiny unroll
        is_first = jnp.logical_or(is_first, row == b * t_note)
        is_last = jnp.logical_or(is_last, row == b * t_note + t_note - 1)
    not_first = jnp.logical_not(is_first).astype(jnp.float32)   # zero x[t-1] tap at t=0
    not_last = jnp.logical_not(is_last).astype(jnp.float32)     # zero x[t+1] tap at t=T-1

    def conv3(h, w_ref):
        # 'SAME' Conv1d(k=3): out[t] = W0.x[t-1] + W1.x[t] + W2.x[t+1];
        # single K=3*Cin bf16 matmul on the lane-concatenated shifted taps.
        n = h.shape[0]
        prev = (pltpu.roll(h, shift=1, axis=0) * not_first).astype(jnp.bfloat16)
        nxt = (pltpu.roll(h, shift=n - 1, axis=0) * not_last).astype(jnp.bfloat16)
        xcat = jnp.concatenate([prev, h.astype(jnp.bfloat16), nxt], axis=-1)
        return jnp.dot(xcat, w_ref[...], preferred_element_type=jnp.float32)

    def layer_norm(h, g, be):
        mean = jnp.mean(h, axis=-1, keepdims=True)
        var = jnp.mean((h - mean) ** 2, axis=-1, keepdims=True)
        return (h - mean) * jax.lax.rsqrt(var + 1e-5) * g + be

    aff0 = aff0_ref[...]            # [3, C] = (conv bias, LN gamma, LN beta)
    aff1 = aff1_ref[...]
    h = conv3(dur_inp, w0_ref) + aff0[0:1]
    h = jnp.maximum(h, 0.0)
    h = layer_norm(h, aff0[1:2], aff0[2:3]) * nonpad
    h = conv3(h, w1_ref) + aff1[0:1]
    h = jnp.maximum(h, 0.0)
    h = layer_norm(h, aff1[1:2], aff1[2:3]) * nonpad

    y = jnp.dot(h.astype(jnp.bfloat16), wl_ref[...],
                preferred_element_type=jnp.float32) + bl_ref[...]
    y = jnp.maximum(y, 0.0) + jnp.log(1.0 + jnp.exp(-jnp.abs(y)))   # softplus
    y = (y + 1.0) * nonpad                                          # [Nn, 1]

    # --- word-level duration scatter, stored lane-major ----------------------
    durw_ref[...] = jnp.sum(y * note_onehot.astype(jnp.float32),
                            axis=0, keepdims=True)                  # [1, BW]


def _to_global_word_id(x2word, num_words):
    """Per-batch word ids 1..W -> global ids b*W + w (0 stays 0 = padding)."""
    B = x2word.shape[0]
    batch = jnp.arange(B, dtype=jnp.int32)[:, None]
    x = x2word.astype(jnp.int32)
    return jnp.where(x > 0, batch * num_words + x, 0)


def fused_duration(p, ph2word, ph_encoder_out, note2words, note_encoder_out,
                   note_nonpadding, spk_embed, num_words):
    """Returns word-level predicted durations [B, W]."""
    B, T_ph, H = ph_encoder_out.shape
    T_note = note_encoder_out.shape[1]
    Nph, Nn, BW = B * T_ph, B * T_note, B * num_words

    ph_gid = _to_global_word_id(ph2word, num_words).reshape(1, Nph)
    note_gid = _to_global_word_id(note2words, num_words).reshape(Nn, 1)
    # ones column appended wrapper-side so counts fall out of the pooling matmul
    ph_h_aug = jnp.concatenate(
        [ph_encoder_out.astype(jnp.float32).reshape(Nph, H),
         jnp.ones((Nph, 1), jnp.float32)], axis=-1).astype(jnp.bfloat16)
    # spk folded into the note hidden slab wrapper-side (one less [Nn,H] DMA)
    note_h_spk = ((note_encoder_out.astype(jnp.float32)
                   + spk_embed.astype(jnp.float32))
                  .reshape(Nn, H).astype(jnp.bfloat16))
    nonpad_note = note_nonpadding.astype(jnp.float32).reshape(Nn, 1)

    args = (ph_gid, ph_h_aug, note_gid, note_h_spk, nonpad_note,
            p["dp_conv0_w"].astype(jnp.bfloat16), p["dp_aff0"],
            p["dp_conv1_w"].astype(jnp.bfloat16), p["dp_aff1"],
            p["dp_lin_w"].astype(jnp.bfloat16), p["dp_lin_b"])
    dur_word = pl.pallas_call(
        functools.partial(_dur_fused_kernel, t_note=T_note),
        grid=(1,),
        in_specs=[_full_spec(a) for a in args],
        out_specs=pl.BlockSpec((1, BW), lambda i: (0, 0)),
        out_shape=jax.ShapeDtypeStruct((1, BW), jnp.float32),
        compiler_params=pltpu.CompilerParams(
            dimension_semantics=("arbitrary",),
            vmem_limit_bytes=_VMEM_LIMIT_BYTES),
    )(*args)
    return dur_word.reshape(B, num_words)


# ---------------------------------------------------------------------------
# Pallas kernel 2: both masked single-head attention problems in one call.
# grid = (problem, batch, T-tile), all "parallel"; kv->k and softmax scale are
# folded into the weights wrapper-side; mask built in-kernel from int32 ids.
# ---------------------------------------------------------------------------
def _attn_pair_kernel(enccat_ref, val_ref, encid_ref, decpos_ref, decid_ref,
                      wk_ref, bk_ref, wq_ref, attn_ref, out_ref):
    enccat = enccat_ref[0, 0]          # [S, 2H] bf16 = [enc ; enc_pos]
    val = val_ref[0, 0]                # [S, H]  bf16
    enc_ids = encid_ref[0, 0]          # [1, S]  int32 (-1 marks padding)
    dec = decpos_ref[0]                # [tq, H] bf16
    dec_ids = decid_ref[0]             # [tq, 1] int32
    wk = wk_ref[0]                     # [2H, H] bf16  (= W1 @ Wk, pre-folded)
    bk = bk_ref[0]                     # [1, H]  f32   (= b1 @ Wk)
    wq = wq_ref[...]                   # [H, H]  bf16  (1/sqrt(H) pre-folded)

    k = jnp.dot(enccat, wk, preferred_element_type=jnp.float32) + bk      # [S, H]
    q = jnp.dot(dec, wq, preferred_element_type=jnp.float32)              # [tq, H]
    s = jax.lax.dot_general(q.astype(jnp.bfloat16), k.astype(jnp.bfloat16),
                            (((1,), (1,)), ((), ())),
                            preferred_element_type=jnp.float32)           # [tq, S]
    s = jnp.where(dec_ids == enc_ids, s, jnp.float32(-1e9))
    m = jnp.max(s, axis=-1, keepdims=True)
    e = jnp.exp(s - m)
    w = e * pl.reciprocal(jnp.sum(e, axis=-1, keepdims=True))             # exact, EUP

    attn_ref[0, 0] = w
    out_ref[0, 0] = jnp.dot(w.astype(jnp.bfloat16), val,
                            preferred_element_type=jnp.float32)


def stacked_attention(p, ph_encoder_inp, enc_pos_ph, ph_encoder_out, ph2word,
                      note_encoder_inp, enc_pos_note, note_encoder_out,
                      note2words, dec_pos, mel2word):
    B, S_ph, H = ph_encoder_inp.shape
    S_note = note_encoder_inp.shape[1]
    S = _round_up(max(S_ph, S_note), 128)   # lane-dense [.,T,S] writeback
    T = dec_pos.shape[1]
    tq = T if T <= 512 else 512             # T-tile: bounds VMEM on long mels
    nT = pl.cdiv(T, tq)

    def pad_feat(x):
        return jnp.pad(x.astype(jnp.bfloat16),
                       ((0, 0), (0, S - x.shape[1]), (0, 0)))

    def pad_ids(ids):
        return jnp.pad(ids.astype(jnp.int32), ((0, 0), (0, S - ids.shape[1])),
                       constant_values=-1)

    # [enc ; enc_pos] concatenated wrapper-side -> single kv matmul in-kernel.
    enc_cat = jnp.stack(
        [jnp.concatenate([pad_feat(ph_encoder_inp), pad_feat(enc_pos_ph)], -1),
         jnp.concatenate([pad_feat(note_encoder_inp), pad_feat(enc_pos_note)], -1)])
    val = jnp.stack([pad_feat(ph_encoder_out), pad_feat(note_encoder_out)])
    enc_ids = jnp.stack([pad_ids(ph2word), pad_ids(note2words)])[:, :, None, :]
    dec = dec_pos.astype(jnp.bfloat16)
    dec_ids = mel2word.astype(jnp.int32)[:, :, None]

    # fold enc_pos_proj -> k_proj and the 1/sqrt(H) scale wrapper-side
    wk0 = jnp.dot(p["enc_pos_proj_w"], p["attn_k_w"])
    wk1 = jnp.dot(p["enc_pos_proj1_w"], p["attn_k_w"])
    bk0 = jnp.dot(p["enc_pos_proj_b"][None, :], p["attn_k_w"])
    bk1 = jnp.dot(p["enc_pos_proj1_b"][None, :], p["attn_k_w"])
    wk = jnp.stack([wk0, wk1]).astype(jnp.bfloat16)        # [2, 2H, H]
    bk = jnp.stack([bk0, bk1])                             # [2, 1, H] f32
    wq = (p["attn_q_w"] * (H ** -0.5)).astype(jnp.bfloat16)

    attn, out = pl.pallas_call(
        _attn_pair_kernel,
        grid=(2, B, nT),
        in_specs=[
            pl.BlockSpec((1, 1, S, 2 * H), lambda i, b, t: (i, b, 0, 0)),
            pl.BlockSpec((1, 1, S, H), lambda i, b, t: (i, b, 0, 0)),
            pl.BlockSpec((1, 1, 1, S), lambda i, b, t: (i, b, 0, 0)),
            pl.BlockSpec((1, tq, H), lambda i, b, t: (b, t, 0)),
            pl.BlockSpec((1, tq, 1), lambda i, b, t: (b, t, 0)),
            pl.BlockSpec((1, 2 * H, H), lambda i, b, t: (i, 0, 0)),
            pl.BlockSpec((1, 1, H), lambda i, b, t: (i, 0, 0)),
            pl.BlockSpec((H, H), lambda i, b, t: (0, 0)),
        ],
        out_specs=[
            pl.BlockSpec((1, 1, tq, S), lambda i, b, t: (i, b, t, 0)),
            pl.BlockSpec((1, 1, tq, H), lambda i, b, t: (i, b, t, 0)),
        ],
        out_shape=[
            jax.ShapeDtypeStruct((2, B, T, S), jnp.float32),
            jax.ShapeDtypeStruct((2, B, T, H), jnp.float32),
        ],
        compiler_params=pltpu.CompilerParams(
            dimension_semantics=("parallel", "parallel", "parallel"),
            vmem_limit_bytes=_VMEM_LIMIT_BYTES),
    )(enc_cat, val, enc_ids, dec, dec_ids, wk, bk, wq)

    return attn[0, :, :, :S_ph], out[0], attn[1, :, :, :S_note], out[1]


# ---------------------------------------------------------------------------
# JAX glue (embeddings, sinusoidal pos-emb, pos-embed construction)
# ---------------------------------------------------------------------------
def sinusoidal_pos_emb(x, dim):
    half = dim // 2
    emb = jnp.exp(jnp.arange(half, dtype=jnp.float32)
                  * -(math.log(10000.0) / (half - 1)))
    emb = x[:, :, None] * emb[None, None, :]
    return jnp.concatenate([jnp.sin(emb), jnp.cos(emb)], axis=-1)


def build_pos_embed(word2word, x2word, dim):
    mask = (word2word[:, :, None] == x2word[:, None, :]).astype(jnp.float32)
    cum = jnp.cumsum(mask, axis=-1)
    denom = jnp.clip(jnp.sum(mask, axis=-1), 1.0, None)[..., None]
    x_pos = jnp.sum(cum / denom * mask, axis=1)
    return sinusoidal_pos_emb(x_pos.astype(jnp.float32), dim)


# ---------------------------------------------------------------------------
# Parameter init (deterministic, synthetic).  Linear weights are stored
# pre-transposed (y = x @ W + b); Conv1d weights are stored tap-major and
# flattened to [3*Cin, Cout] (PyTorch [Cout,Cin,K] -> permute(2,1,0).reshape).
# ---------------------------------------------------------------------------
def init_params(key, vocab=50, H=32, n_chans=128):
    ks = jax.random.split(key, 24)
    nrm = lambda k, shape, std: jax.random.normal(k, shape, jnp.float32) * std
    p = {}
    p["embed_tokens"] = nrm(ks[0], (vocab, H), H ** -0.5).at[0].set(0.0)
    p["note_emb"] = nrm(ks[1], (100, H), H ** -0.5).at[0].set(0.0)
    p["type_emb"] = nrm(ks[2], (5, H), H ** -0.5).at[0].set(0.0)
    p["dur_ln_w"] = nrm(ks[3], (1, H), 1.0)
    p["dur_ln_b"] = nrm(ks[4], (H,), 0.02)
    p["enc_pos_proj_w"] = nrm(ks[5], (2 * H, H), (2 * H) ** -0.5)
    p["enc_pos_proj_b"] = nrm(ks[6], (H,), 0.02)
    p["enc_pos_proj1_w"] = nrm(ks[7], (2 * H, H), (2 * H) ** -0.5)
    p["enc_pos_proj1_b"] = nrm(ks[8], (H,), 0.02)
    p["attn_q_w"] = nrm(ks[9], (H, H), H ** -0.5)    # shared by attn & ls_attn
    p["attn_k_w"] = nrm(ks[10], (H, H), H ** -0.5)
    # DurationPredictor (idim=H, n_chans=128, kernel=3, 2 layers)
    conv0 = nrm(ks[11], (3, H, n_chans), (3 * H) ** -0.5)
    conv1 = nrm(ks[13], (3, n_chans, n_chans), (3 * n_chans) ** -0.5)
    p["dp_conv0_w"] = conv0.reshape(3 * H, n_chans)
    p["dp_conv1_w"] = conv1.reshape(3 * n_chans, n_chans)
    # per-layer affine slab: rows = (conv bias, LN gamma, LN beta)
    p["dp_aff0"] = jnp.stack([nrm(ks[12], (n_chans,), 0.02),
                              jnp.ones((n_chans,), jnp.float32),
                              jnp.zeros((n_chans,), jnp.float32)])
    p["dp_aff1"] = jnp.stack([nrm(ks[14], (n_chans,), 0.02),
                              jnp.ones((n_chans,), jnp.float32),
                              jnp.zeros((n_chans,), jnp.float32)])
    p["dp_lin_w"] = nrm(ks[15], (n_chans, 1), n_chans ** -0.5)
    p["dp_lin_b"] = jnp.zeros((1, 1), jnp.float32)
    return p


# ---------------------------------------------------------------------------
# WordScoreEncoder.forward (note_model='attn' path, mel2word given)
# ---------------------------------------------------------------------------
def word_score_encoder_forward(p, txt_tokens, ph2word, word_len, mel2word,
                               note_tokens, note_durs, note_types, note2words,
                               spk_embed):
    H = HPARAMS["hidden_size"]
    ret = {}
    W = int(word_len)
    word2word = jnp.arange(W, dtype=jnp.int32)[None, :] + 1

    src_nonpadding = (txt_tokens > 0).astype(jnp.float32)[:, :, None]
    note_nonpadding = (note_durs > 0).astype(jnp.float32)[:, :, None]

    # ph encoder (TODO(synk): transformer layers omitted — embedding only)
    ph_encoder_out = p["embed_tokens"][txt_tokens] * math.sqrt(H) * src_nonpadding
    ret["ph_encoder_out"] = ph_encoder_out

    # NoteEncoder
    note_x = (p["note_emb"][note_tokens] * math.sqrt(H)
              + p["type_emb"][note_types] * math.sqrt(H)
              + note_durs[:, :, None] * p["dur_ln_w"].reshape(1, 1, H)
              + p["dur_ln_b"].reshape(1, 1, H))
    note_encoder_out = note_x * note_nonpadding
    ret["note_encoder_out"] = note_encoder_out

    # fused Pallas kernel 1: word pooling + expand + duration predictor + scatter
    ret["dur"] = fused_duration(p, ph2word, ph_encoder_out, note2words,
                                note_encoder_out, note_nonpadding, spk_embed, W)
    ret["mel2word"] = mel2word

    tgt_nonpadding = (mel2word > 0).astype(jnp.float32)[:, :, None]

    ph_encoder_inp = (ph_encoder_out + spk_embed) * src_nonpadding
    note_encoder_inp = (note_encoder_out + spk_embed) * note_nonpadding
    enc_pos = build_pos_embed(word2word, ph2word, H)
    enc_pos1 = build_pos_embed(word2word, note2words, H)
    dec_pos = build_pos_embed(word2word, mel2word, H)

    # fused Pallas kernel 2: both masked attention problems (attn / ls_attn)
    attn_w, x, ls_w, note_x_out = stacked_attention(
        p, ph_encoder_inp, enc_pos, ph_encoder_out, ph2word,
        note_encoder_inp, enc_pos1, note_encoder_out, note2words,
        dec_pos, mel2word)
    ret["attn"] = attn_w
    ret["ls_attn"] = ls_w

    x = x * tgt_nonpadding
    ret["x_mask"] = tgt_nonpadding
    ret["decoder_inp"] = x
    ret["expand_fusion"] = note_x_out
    return ret


# ---------------------------------------------------------------------------
if __name__ == "__main__":
    B, T_ph, T_note, T_mel, W, H = 2, 8, 8, 16, 4, 32
    key = jax.random.PRNGKey(0)
    kp, kd = jax.random.split(key)
    params = init_params(kp, vocab=50, H=H, n_chans=128)
    ks = jax.random.split(kd, 8)

    txt_tokens = jax.random.randint(ks[0], (B, T_ph), 1, 50, dtype=jnp.int32)
    txt_tokens = txt_tokens.at[1, -2:].set(0)
    ph2word = jnp.tile(jnp.array([1, 1, 2, 2, 3, 3, 4, 4], jnp.int32)[None], (B, 1))
    ph2word = ph2word.at[1, -2:].set(0)

    note_tokens = jax.random.randint(ks[1], (B, T_note), 1, 100, dtype=jnp.int32)
    note_types = jax.random.randint(ks[2], (B, T_note), 1, 5, dtype=jnp.int32)
    note_durs = jax.random.uniform(ks[3], (B, T_note), jnp.float32, 0.1, 1.0)
    note2words = jnp.tile(jnp.array([1, 1, 2, 2, 3, 3, 4, 4], jnp.int32)[None], (B, 1))
    note_tokens = note_tokens.at[1, -1].set(0)
    note_durs = note_durs.at[1, -1].set(0.0)
    note2words = note2words.at[1, -1].set(0)

    mel2word = jnp.tile(jnp.repeat(jnp.arange(1, W + 1, dtype=jnp.int32),
                                   T_mel // W)[None], (B, 1))
    mel2word = mel2word.at[1, -3:].set(0)

    spk_embed = jax.random.normal(ks[4], (B, 1, H), jnp.float32)

    ret = word_score_encoder_forward(params, txt_tokens, ph2word, W, mel2word,
                                     note_tokens, note_durs, note_types,
                                     note2words, spk_embed)
    jax.block_until_ready(ret["decoder_inp"])
    jax.block_until_ready(ret["expand_fusion"])
    jax.block_until_ready(ret["dur"])
    assert ret["decoder_inp"].shape == (B, T_mel, H)
    assert ret["expand_fusion"].shape == (B, T_mel, H)
    assert ret["attn"].shape == (B, T_mel, T_ph)
    assert ret["ls_attn"].shape == (B, T_mel, T_note)
    assert ret["dur"].shape == (B, W)
    assert bool(jnp.all(jnp.isfinite(ret["decoder_inp"])))
    assert bool(jnp.all(jnp.isfinite(ret["dur"])))
    print("KERNEL_OK")
</pallas_src>

<mosaic_0001>
module attributes {stable_mosaic.version = 11 : i64} {
  func.func @_dur_fused_kernel(%arg0: i32, %arg1: memref<1x16xi32, #tpu.memory_space<vmem>>, %arg2: memref<16x33xbf16, #tpu.memory_space<vmem>>, %arg3: memref<16x1xi32, #tpu.memory_space<vmem>>, %arg4: memref<16x32xbf16, #tpu.memory_space<vmem>>, %arg5: memref<16x1xf32, #tpu.memory_space<vmem>>, %arg6: memref<96x128xbf16, #tpu.memory_space<vmem>>, %arg7: memref<3x128xf32, #tpu.memory_space<vmem>>, %arg8: memref<384x128xbf16, #tpu.memory_space<vmem>>, %arg9: memref<3x128xf32, #tpu.memory_space<vmem>>, %arg10: memref<128x1xbf16, #tpu.memory_space<vmem>>, %arg11: memref<1x1xf32, #tpu.memory_space<vmem>>, %arg12: memref<1x8xf32, #tpu.memory_space<vmem>>) attributes {dimension_semantics = [#tpu.dimension_semantics<arbitrary>], iteration_bounds = array<i64: 1>, scalar_prefetch = 0 : i64, scratch_operands = 0 : i64, tpu.core_type = #tpu.core_type<tc>, window_params = [{pipeline_mode = #tpu.pipeline_mode<synchronous>, transform_indices = @transform_0, window_bounds = array<i64: 1, 16>}, {pipeline_mode = #tpu.pipeline_mode<synchronous>, transform_indices = @transform_1, window_bounds = array<i64: 16, 33>}, {pipeline_mode = #tpu.pipeline_mode<synchronous>, transform_indices = @transform_2, window_bounds = array<i64: 16, 1>}, {pipeline_mode = #tpu.pipeline_mode<synchronous>, transform_indices = @transform_3, window_bounds = array<i64: 16, 32>}, {pipeline_mode = #tpu.pipeline_mode<synchronous>, transform_indices = @transform_4, window_bounds = array<i64: 16, 1>}, {pipeline_mode = #tpu.pipeline_mode<synchronous>, transform_indices = @transform_5, window_bounds = array<i64: 96, 128>}, {pipeline_mode = #tpu.pipeline_mode<synchronous>, transform_indices = @transform_6, window_bounds = array<i64: 3, 128>}, {pipeline_mode = #tpu.pipeline_mode<synchronous>, transform_indices = @transform_7, window_bounds = array<i64: 384, 128>}, {pipeline_mode = #tpu.pipeline_mode<synchronous>, transform_indices = @transform_8, window_bounds = array<i64: 3, 128>}, {pipeline_mode = #tpu.pipeline_mode<synchronous>, transform_indices = @transform_9, window_bounds = array<i64: 128, 1>}, {pipeline_mode = #tpu.pipeline_mode<synchronous>, transform_indices = @transform_10, window_bounds = array<i64: 1, 1>}, {pipeline_mode = #tpu.pipeline_mode<synchronous>, transform_indices = @transform_11, window_bounds = array<i64: 1, 8>}]} {
    %c0 = arith.constant 0 : index
    %c0_0 = arith.constant 0 : index
    %0 = vector.load %arg1[%c0, %c0_0] : memref<1x16xi32, #tpu.memory_space<vmem>>, vector<1x16xi32>
    %c0_1 = arith.constant 0 : index
    %c0_2 = arith.constant 0 : index
    %1 = vector.load %arg2[%c0_1, %c0_2] : memref<16x33xbf16, #tpu.memory_space<vmem>>, vector<16x33xbf16>
    %c0_3 = arith.constant 0 : index
    %c0_4 = arith.constant 0 : index
    %2 = vector.load %arg3[%c0_3, %c0_4] : memref<16x1xi32, #tpu.memory_space<vmem>>, vector<16x1xi32>
    %c0_5 = arith.constant 0 : index
    %c0_6 = arith.constant 0 : index
    %3 = vector.load %arg4[%c0_5, %c0_6] : memref<16x32xbf16, #tpu.memory_space<vmem>>, vector<16x32xbf16>
    %c0_7 = arith.constant 0 : index
    %c0_8 = arith.constant 0 : index
    %4 = vector.load %arg5[%c0_7, %c0_8] : memref<16x1xf32, #tpu.memory_space<vmem>>, vector<16x1xf32>
    %5 = tpu.iota {dimensions = array<i32: 0>} : vector<8x1xi32>
    %c1_i32 = arith.constant 1 : i32
    %6 = vector.broadcast %c1_i32 : i32 to vector<8x1xi32>
    %7 = arith.addi %5, %6 : vector<8x1xi32>
    %8 = tpu.iota {dimensions = array<i32: 1>} : vector<1x8xi32>
    %c1_i32_9 = arith.constant 1 : i32
    %9 = vector.broadcast %c1_i32_9 : i32 to vector<1x8xi32>
    %10 = arith.addi %8, %9 : vector<1x8xi32>
    %11 = vector.broadcast %7 : vector<8x1xi32> to vector<8x16xi32>
    %12 = vector.broadcast %0 : vector<1x16xi32> to vector<8x16xi32>
    %13 = arith.cmpi eq, %11, %12 : vector<8x16xi32>
    %14 = arith.extui %13 : vector<8x16xi1> to vector<8x16xi32>
    %15 = arith.sitofp %14 : vector<8x16xi32> to vector<8x16xf32>
    %16 = arith.truncf %15 : vector<8x16xf32> to vector<8x16xbf16>
    %cst = arith.constant dense<0.000000e+00> : vector<8x33xf32>
    %17 = tpu.matmul %16, %1, %cst {dimension_numbers = #tpu.dot_dimension_numbers<[1], [0], [0], [1], [0, 0, 1, 1], [], []>} : vector<8x16xbf16>, vector<16x33xbf16>, vector<8x33xf32> -> vector<8x33xf32>
    %18 = vector.extract_strided_slice %17 {offsets = [0, 32], sizes = [8, 1], strides = [1, 1]} : vector<8x33xf32> to vector<8x1xf32>
    %cst_10 = arith.constant 1.000000e+00 : f32
    %19 = vector.broadcast %cst_10 : f32 to vector<8x1xf32>
    %20 = arith.maximumf %18, %19 : vector<8x1xf32>
    %21 = vector.extract_strided_slice %17 {offsets = [0, 0], sizes = [8, 32], strides = [1, 1]} : vector<8x33xf32> to vector<8x32xf32>
    %22 = vector.broadcast %20 : vector<8x1xf32> to vector<8x32xf32>
    %23 = arith.divf %21, %22 : vector<8x32xf32>
    %24 = arith.truncf %23 : vector<8x32xf32> to vector<8x32xbf16>
    %25 = vector.broadcast %2 : vector<16x1xi32> to vector<16x8xi32>
    %26 = vector.broadcast %10 : vector<1x8xi32> to vector<16x8xi32>
    %27 = arith.cmpi eq, %25, %26 : vector<16x8xi32>
    %28 = arith.extui %27 : vector<16x8xi1> to vector<16x8xi32>
    %29 = arith.sitofp %28 : vector<16x8xi32> to vector<16x8xf32>
    %30 = arith.truncf %29 : vector<16x8xf32> to vector<16x8xbf16>
    %cst_11 = arith.constant dense<0.000000e+00> : vector<16x32xf32>
    %31 = tpu.matmul %30, %24, %cst_11 {dimension_numbers = #tpu.dot_dimension_numbers<[1], [0], [0], [1], [0, 0, 1, 1], [], []>} : vector<16x8xbf16>, vector<8x32xbf16>, vector<16x32xf32> -> vector<16x32xf32>
    %32 = arith.extf %3 : vector<16x32xbf16> to vector<16x32xf32>
    %33 = arith.addf %32, %31 : vector<16x32xf32>
    %34 = vector.broadcast %4 : vector<16x1xf32> to vector<16x32xf32>
    %35 = arith.mulf %33, %34 : vector<16x32xf32>
    %36 = tpu.iota {dimensions = array<i32: 0>} : vector<16x1xi32>
    %c0_i32 = arith.constant 0 : i32
    %37 = vector.broadcast %c0_i32 : i32 to vector<16x1xi32>
    %38 = arith.cmpi eq, %36, %37 : vector<16x1xi32>
    %c7_i32 = arith.constant 7 : i32
    %39 = vector.broadcast %c7_i32 : i32 to vector<16x1xi32>
    %40 = arith.cmpi eq, %36, %39 : vector<16x1xi32>
    %c8_i32 = arith.constant 8 : i32
    %41 = vector.broadcast %c8_i32 : i32 to vector<16x1xi32>
    %42 = arith.cmpi eq, %36, %41 : vector<16x1xi32>
    %43 = arith.ori %38, %42 : vector<16x1xi1>
    %c15_i32 = arith.constant 15 : i32
    %44 = vector.broadcast %c15_i32 : i32 to vector<16x1xi32>
    %45 = arith.cmpi eq, %36, %44 : vector<16x1xi32>
    %46 = arith.ori %40, %45 : vector<16x1xi1>
    %cst_12 = arith.constant dense<true> : vector<16x1xi1>
    %47 = arith.xori %43, %cst_12 : vector<16x1xi1>
    %48 = arith.extui %47 : vector<16x1xi1> to vector<16x1xi32>
    %49 = arith.sitofp %48 : vector<16x1xi32> to vector<16x1xf32>
    %cst_13 = arith.constant dense<true> : vector<16x1xi1>
    %50 = arith.xori %46, %cst_13 : vector<16x1xi1>
    %51 = arith.extui %50 : vector<16x1xi1> to vector<16x1xi32>
    %52 = arith.sitofp %51 : vector<16x1xi32> to vector<16x1xf32>
    %c0_14 = arith.constant 0 : index
    %c0_15 = arith.constant 0 : index
    %53 = vector.load %arg7[%c0_14, %c0_15] : memref<3x128xf32, #tpu.memory_space<vmem>>, vector<3x128xf32>
    %c0_16 = arith.constant 0 : index
    %c0_17 = arith.constant 0 : index
    %54 = vector.load %arg9[%c0_16, %c0_17] : memref<3x128xf32, #tpu.memory_space<vmem>>, vector<3x128xf32>
    %c1_i32_18 = arith.constant 1 : i32
    %55 = tpu.dynamic_rotate %35 by %c1_i32_18 dim 0 : vector<16x32xf32>, i32 -> vector<16x32xf32>
    %56 = vector.broadcast %49 : vector<16x1xf32> to vector<16x32xf32>
    %57 = arith.mulf %55, %56 : vector<16x32xf32>
    %58 = arith.truncf %57 : vector<16x32xf32> to vector<16x32xbf16>
    %c15_i32_19 = arith.constant 15 : i32
    %59 = tpu.dynamic_rotate %35 by %c15_i32_19 dim 0 : vector<16x32xf32>, i32 -> vector<16x32xf32>
    %60 = vector.broadcast %52 : vector<16x1xf32> to vector<16x32xf32>
    %61 = arith.mulf %59, %60 : vector<16x32xf32>
    %62 = arith.truncf %61 : vector<16x32xf32> to vector<16x32xbf16>
    %63 = arith.truncf %35 : vector<16x32xf32> to vector<16x32xbf16>
    %64 = tpu.concatenate %58, %63, %62 in 1 : vector<16x32xbf16>, vector<16x32xbf16>, vector<16x32xbf16> -> vector<16x96xbf16>
    %c0_20 = arith.constant 0 : index
    %c0_21 = arith.constant 0 : index
    %65 = vector.load %arg6[%c0_20, %c0_21] : memref<96x128xbf16, #tpu.memory_space<vmem>>, vector<96x128xbf16>
    %cst_22 = arith.constant dense<0.000000e+00> : vector<16x128xf32>
    %66 = tpu.matmul %64, %65, %cst_22 {dimension_numbers = #tpu.dot_dimension_numbers<[1], [0], [0], [1], [0, 0, 1, 1], [], []>} : vector<16x96xbf16>, vector<96x128xbf16>, vector<16x128xf32> -> vector<16x128xf32>
    %67 = vector.extract_strided_slice %53 {offsets = [0, 0], sizes = [1, 128], strides = [1, 1]} : vector<3x128xf32> to vector<1x128xf32>
    %68 = vector.broadcast %67 : vector<1x128xf32> to vector<16x128xf32>
    %69 = arith.addf %66, %68 : vector<16x128xf32>
    %cst_23 = arith.constant 0.000000e+00 : f32
    %70 = vector.broadcast %cst_23 : f32 to vector<16x128xf32>
    %71 = arith.maximumf %69, %70 : vector<16x128xf32>
    %72 = vector.extract_strided_slice %53 {offsets = [1, 0], sizes = [1, 128], strides = [1, 1]} : vector<3x128xf32> to vector<1x128xf32>
    %73 = vector.extract_strided_slice %53 {offsets = [2, 0], sizes = [1, 128], strides = [1, 1]} : vector<3x128xf32> to vector<1x128xf32>
    %cst_24 = arith.constant dense<0.000000e+00> : vector<16xf32>
    %74 = vector.multi_reduction <add>, %71, %cst_24 [1] : vector<16x128xf32> to vector<16xf32>
    %75 = vector.shape_cast %74 : vector<16xf32> to vector<16x1xf32>
    %cst_25 = arith.constant 1.280000e+02 : f32
    %76 = vector.broadcast %cst_25 : f32 to vector<16x1xf32>
    %77 = arith.divf %75, %76 : vector<16x1xf32>
    %78 = vector.broadcast %77 : vector<16x1xf32> to vector<16x128xf32>
    %79 = arith.subf %71, %78 : vector<16x128xf32>
    %80 = arith.mulf %79, %79 : vector<16x128xf32>
    %cst_26 = arith.constant dense<0.000000e+00> : vector<16xf32>
    %81 = vector.multi_reduction <add>, %80, %cst_26 [1] : vector<16x128xf32> to vector<16xf32>
    %82 = vector.shape_cast %81 : vector<16xf32> to vector<16x1xf32>
    %cst_27 = arith.constant 1.280000e+02 : f32
    %83 = vector.broadcast %cst_27 : f32 to vector<16x1xf32>
    %84 = arith.divf %82, %83 : vector<16x1xf32>
    %85 = vector.broadcast %77 : vector<16x1xf32> to vector<16x128xf32>
    %86 = arith.subf %71, %85 : vector<16x128xf32>
    %cst_28 = arith.constant 9.99999974E-6 : f32
    %87 = vector.broadcast %cst_28 : f32 to vector<16x1xf32>
    %88 = arith.addf %84, %87 : vector<16x1xf32>
    %89 = math.rsqrt %88 : vector<16x1xf32>
    %90 = vector.broadcast %89 : vector<16x1xf32> to vector<16x128xf32>
    %91 = arith.mulf %86, %90 : vector<16x128xf32>
    %92 = vector.broadcast %72 : vector<1x128xf32> to vector<16x128xf32>
    %93 = arith.mulf %91, %92 : vector<16x128xf32>
    %94 = vector.broadcast %73 : vector<1x128xf32> to vector<16x128xf32>
    %95 = arith.addf %93, %94 : vector<16x128xf32>
    %96 = vector.broadcast %4 : vector<16x1xf32> to vector<16x128xf32>
    %97 = arith.mulf %95, %96 : vector<16x128xf32>
    %c1_i32_29 = arith.constant 1 : i32
    %98 = tpu.dynamic_rotate %97 by %c1_i32_29 dim 0 : vector<16x128xf32>, i32 -> vector<16x128xf32>
    %99 = vector.broadcast %49 : vector<16x1xf32> to vector<16x128xf32>
    %100 = arith.mulf %98, %99 : vector<16x128xf32>
    %101 = arith.truncf %100 : vector<16x128xf32> to vector<16x128xbf16>
    %c15_i32_30 = arith.constant 15 : i32
    %102 = tpu.dynamic_rotate %97 by %c15_i32_30 dim 0 : vector<16x128xf32>, i32 -> vector<16x128xf32>
    %103 = vector.broadcast %52 : vector<16x1xf32> to vector<16x128xf32>
    %104 = arith.mulf %102, %103 : vector<16x128xf32>
    %105 = arith.truncf %104 : vector<16x128xf32> to vector<16x128xbf16>
    %106 = arith.truncf %97 : vector<16x128xf32> to vector<16x128xbf16>
    %107 = tpu.concatenate %101, %106, %105 in 1 : vector<16x128xbf16>, vector<16x128xbf16>, vector<16x128xbf16> -> vector<16x384xbf16>
    %c0_31 = arith.constant 0 : index
    %c0_32 = arith.constant 0 : index
    %108 = vector.load %arg8[%c0_31, %c0_32] : memref<384x128xbf16, #tpu.memory_space<vmem>>, vector<384x128xbf16>
    %cst_33 = arith.constant dense<0.000000e+00> : vector<16x128xf32>
    %109 = tpu.matmul %107, %108, %cst_33 {dimension_numbers = #tpu.dot_dimension_numbers<[1], [0], [0], [1], [0, 0, 1, 1], [], []>} : vector<16x384xbf16>, vector<384x128xbf16>, vector<16x128xf32> -> vector<16x128xf32>
    %110 = vector.extract_strided_slice %54 {offsets = [0, 0], sizes = [1, 128], strides = [1, 1]} : vector<3x128xf32> to vector<1x128xf32>
    %111 = vector.broadcast %110 : vector<1x128xf32> to vector<16x128xf32>
    %112 = arith.addf %109, %111 : vector<16x128xf32>
    %cst_34 = arith.constant 0.000000e+00 : f32
    %113 = vector.broadcast %cst_34 : f32 to vector<16x128xf32>
    %114 = arith.maximumf %112, %113 : vector<16x128xf32>
    %115 = vector.extract_strided_slice %54 {offsets = [1, 0], sizes = [1, 128], strides = [1, 1]} : vector<3x128xf32> to vector<1x128xf32>
    %116 = vector.extract_strided_slice %54 {offsets = [2, 0], sizes = [1, 128], strides = [1, 1]} : vector<3x128xf32> to vector<1x128xf32>
    %cst_35 = arith.constant dense<0.000000e+00> : vector<16xf32>
    %117 = vector.multi_reduction <add>, %114, %cst_35 [1] : vector<16x128xf32> to vector<16xf32>
    %118 = vector.shape_cast %117 : vector<16xf32> to vector<16x1xf32>
    %cst_36 = arith.constant 1.280000e+02 : f32
    %119 = vector.broadcast %cst_36 : f32 to vector<16x1xf32>
    %120 = arith.divf %118, %119 : vector<16x1xf32>
    %121 = vector.broadcast %120 : vector<16x1xf32> to vector<16x128xf32>
    %122 = arith.subf %114, %121 : vector<16x128xf32>
    %123 = arith.mulf %122, %122 : vector<16x128xf32>
    %cst_37 = arith.constant dense<0.000000e+00> : vector<16xf32>
    %124 = vector.multi_reduction <add>, %123, %cst_37 [1] : vector<16x128xf32> to vector<16xf32>
    %125 = vector.shape_cast %124 : vector<16xf32> to vector<16x1xf32>
    %cst_38 = arith.constant 1.280000e+02 : f32
    %126 = vector.broadcast %cst_38 : f32 to vector<16x1xf32>
    %127 = arith.divf %125, %126 : vector<16x1xf32>
    %128 = vector.broadcast %120 : vector<16x1xf32> to vector<16x128xf32>
    %129 = arith.subf %114, %128 : vector<16x128xf32>
    %cst_39 = arith.constant 9.99999974E-6 : f32
    %130 = vector.broadcast %cst_39 : f32 to vector<16x1xf32>
    %131 = arith.addf %127, %130 : vector<16x1xf32>
    %132 = math.rsqrt %131 : vector<16x1xf32>
    %133 = vector.broadcast %132 : vector<16x1xf32> to vector<16x128xf32>
    %134 = arith.mulf %129, %133 : vector<16x128xf32>
    %135 = vector.broadcast %115 : vector<1x128xf32> to vector<16x128xf32>
    %136 = arith.mulf %134, %135 : vector<16x128xf32>
    %137 = vector.broadcast %116 : vector<1x128xf32> to vector<16x128xf32>
    %138 = arith.addf %136, %137 : vector<16x128xf32>
    %139 = vector.broadcast %4 : vector<16x1xf32> to vector<16x128xf32>
    %140 = arith.mulf %138, %139 : vector<16x128xf32>
    %141 = arith.truncf %140 : vector<16x128xf32> to vector<16x128xbf16>
    %c0_40 = arith.constant 0 : index
    %c0_41 = arith.constant 0 : index
    %142 = vector.load %arg10[%c0_40, %c0_41] : memref<128x1xbf16, #tpu.memory_space<vmem>>, vector<128x1xbf16>
    %cst_42 = arith.constant dense<0.000000e+00> : vector<16x1xf32>
    %143 = tpu.matmul %141, %142, %cst_42 {dimension_numbers = #tpu.dot_dimension_numbers<[1], [0], [0], [1], [0, 0, 1, 1], [], []>} : vector<16x128xbf16>, vector<128x1xbf16>, vector<16x1xf32> -> vector<16x1xf32>
    %c0_43 = arith.constant 0 : index
    %c0_44 = arith.constant 0 : index
    %144 = vector.load %arg11[%c0_43, %c0_44] : memref<1x1xf32, #tpu.memory_space<vmem>>, vector<1x1xf32>
    %145 = vector.broadcast %144 : vector<1x1xf32> to vector<16x1xf32>
    %146 = arith.addf %143, %145 : vector<16x1xf32>
    %cst_45 = arith.constant 0.000000e+00 : f32
    %147 = vector.broadcast %cst_45 : f32 to vector<16x1xf32>
    %148 = arith.maximumf %146, %147 : vector<16x1xf32>
    %149 = math.absf %146 : vector<16x1xf32>
    %cst_46 = arith.constant 0.000000e+00 : f32
    %150 = vector.broadcast %cst_46 : f32 to vector<16x1xf32>
    %151 = arith.subf %150, %149 : vector<16x1xf32>
    %152 = math.exp %151 : vector<16x1xf32>
    %cst_47 = arith.constant 1.000000e+00 : f32
    %153 = vector.broadcast %cst_47 : f32 to vector<16x1xf32>
    %154 = arith.addf %153, %152 : vector<16x1xf32>
    %155 = math.log %154 : vector<16x1xf32>
    %156 = arith.addf %148, %155 : vector<16x1xf32>
    %cst_48 = arith.constant 1.000000e+00 : f32
    %157 = vector.broadcast %cst_48 : f32 to vector<16x1xf32>
    %158 = arith.addf %156, %157 : vector<16x1xf32>
    %159 = arith.mulf %158, %4 : vector<16x1xf32>
    %160 = arith.extf %30 : vector<16x8xbf16> to vector<16x8xf32>
    %161 = vector.broadcast %159 : vector<16x1xf32> to vector<16x8xf32>
    %162 = arith.mulf %161, %160 : vector<16x8xf32>
    %cst_49 = arith.constant dense<0.000000e+00> : vector<8xf32>
    %163 = vector.multi_reduction <add>, %162, %cst_49 [0] : vector<16x8xf32> to vector<8xf32>
    %164 = vector.shape_cast %163 : vector<8xf32> to vector<1x8xf32>
    %c0_50 = arith.constant 0 : index
    %c0_51 = arith.constant 0 : index
    %165 = vector.load %arg12[%c0_50, %c0_51] : memref<1x8xf32, #tpu.memory_space<vmem>>, vector<1x8xf32>
    tpu.vector_store %arg12[%c0_50, %c0_51], %164 {strides = array<i32>} : memref<1x8xf32, #tpu.memory_space<vmem>>, vector<1x8xf32>,
    return
  }
  func.func @transform_0(%arg0: i32) -> (i32, i32) {
    %c0_i32 = arith.constant 0 : i32
    %c0_i32_0 = arith.constant 0 : i32
    %c0_i32_1 = arith.constant 0 : i32
    return %c0_i32, %c0_i32_0 : i32, i32
  }
  func.func @transform_1(%arg0: i32) -> (i32, i32) {
    %c0_i32 = arith.constant 0 : i32
    %c0_i32_0 = arith.constant 0 : i32
    %c0_i32_1 = arith.constant 0 : i32
    return %c0_i32, %c0_i32_0 : i32, i32
  }
  func.func @transform_2(%arg0: i32) -> (i32, i32) {
    %c0_i32 = arith.constant 0 : i32
    %c0_i32_0 = arith.constant 0 : i32
    %c0_i32_1 = arith.constant 0 : i32
    return %c0_i32, %c0_i32_0 : i32, i32
  }
  func.func @transform_3(%arg0: i32) -> (i32, i32) {
    %c0_i32 = arith.constant 0 : i32
    %c0_i32_0 = arith.constant 0 : i32
    %c0_i32_1 = arith.constant 0 : i32
    return %c0_i32, %c0_i32_0 : i32, i32
  }
  func.func @transform_4(%arg0: i32) -> (i32, i32) {
    %c0_i32 = arith.constant 0 : i32
    %c0_i32_0 = arith.constant 0 : i32
    %c0_i32_1 = arith.constant 0 : i32
    return %c0_i32, %c0_i32_0 : i32, i32
  }
  func.func @transform_5(%arg0: i32) -> (i32, i32) {
    %c0_i32 = arith.constant 0 : i32
    %c0_i32_0 = arith.constant 0 : i32
    %c0_i32_1 = arith.constant 0 : i32
    return %c0_i32, %c0_i32_0 : i32, i32
  }
  func.func @transform_6(%arg0: i32) -> (i32, i32) {
    %c0_i32 = arith.constant 0 : i32
    %c0_i32_0 = arith.constant 0 : i32
    %c0_i32_1 = arith.constant 0 : i32
    return %c0_i32, %c0_i32_0 : i32, i32
  }
  func.func @transform_7(%arg0: i32) -> (i32, i32) {
    %c0_i32 = arith.constant 0 : i32
    %c0_i32_0 = arith.constant 0 : i32
    %c0_i32_1 = arith.constant 0 : i32
    return %c0_i32, %c0_i32_0 : i32, i32
  }
  func.func @transform_8(%arg0: i32) -> (i32, i32) {
    %c0_i32 = arith.constant 0 : i32
    %c0_i32_0 = arith.constant 0 : i32
    %c0_i32_1 = arith.constant 0 : i32
    return %c0_i32, %c0_i32_0 : i32, i32
  }
  func.func @transform_9(%arg0: i32) -> (i32, i32) {
    %c0_i32 = arith.constant 0 : i32
    %c0_i32_0 = arith.constant 0 : i32
    %c0_i32_1 = arith.constant 0 : i32
    return %c0_i32, %c0_i32_0 : i32, i32
  }
  func.func @transform_10(%arg0: i32) -> (i32, i32) {
    %c0_i32 = arith.constant 0 : i32
    %c0_i32_0 = arith.constant 0 : i32
    %c0_i32_1 = arith.constant 0 : i32
    return %c0_i32, %c0_i32_0 : i32, i32
  }
  func.func @transform_11(%arg0: i32) -> (i32, i32) {
    %c0_i32 = arith.constant 0 : i32
    %c0_i32_0 = arith.constant 0 : i32
    %c0_i32_1 = arith.constant 0 : i32
    return %c0_i32, %c0_i32_0 : i32, i32
  }
}

</mosaic_0001>

<llo_original>
// kernel: tpu_custom_call.1
$region0: #{tpu_custom_call.1}
  #allocation0 [shape = 'u32[]', space=smem, size = 0x4, offset = 0x4, fixed_abs, tag = 'smem constant byte address 0x4 - core index']
  #allocation1 [shape = 'u32[144,128]{1,0:T(1,128)}', space=vmem, size = 0x12000, scoped, tag = 'internal scratch']
  #allocation2 [shape = 'f32[1,1]{1,0:T(1,128)S(1)}', space=vmem, size = 0x200, scoped, tag = 'scoped memory for tpu_custom_call.1']
  %s0 = inlined_call_operand.vmem [shape: s32[1,16], index: 0, kind: input, shape index: {}]
  %s1 = inlined_call_operand.vmem [shape: bf16[16,33], index: 1, kind: input, shape index: {}]
  %s2 = inlined_call_operand.vmem [shape: s32[16,1], index: 2, kind: input, shape index: {}]
  %s3 = inlined_call_operand.vmem [shape: bf16[16,32], index: 3, kind: input, shape index: {}]
  %s4 = inlined_call_operand.vmem [shape: f32[16,1], index: 4, kind: input, shape index: {}]
  %s5 = inlined_call_operand.vmem [shape: bf16[96,128], index: 5, kind: input, shape index: {}]
  %s6 = inlined_call_operand.vmem [shape: f32[3,128], index: 6, kind: input, shape index: {}]
  %s7 = inlined_call_operand.hbm [shape: bf16[384,128], index: 7, kind: input, shape index: {}]
  %s8 = inlined_call_operand.vmem [shape: f32[3,128], index: 8, kind: input, shape index: {}]
  %s9 = inlined_call_operand.vmem [shape: bf16[128,1], index: 9, kind: input, shape index: {}]
  %s10 = inlined_call_operand.<no memory space> [shape: f32[1,1], index: 10, kind: input, shape index: {}]
  %s11 = inlined_call_operand.hbm [shape: f32[1,8], index: 11, kind: output, shape index: {}]
  %s12 = sld [smem:[#allocation0]]
  $region58: #{tpu_custom_call.1} parent=0
    _
  %s14 = ssub.s32 1, %s12
  %s15 = scalar_select 0, %s14, %s12
  %v16 = vstv %s10
  %17 = vst [vmem:[#allocation2] sm:$0x1] %v16
  $region1: #{tpu_custom_call.1} parent=0
    #allocation3 [shape = 'u8[98304]{0}', space=vmem, size = 0x18000, scoped, tag = 'input window, operand 7, single buffered']
    #allocation4 [shape = 's32[1]{0}', space=sflag, size = 0x4, scoped, tag = 'scoped memory for tpu_custom_call.1']
    #allocation5 [shape = 's32[1]{0}', space=sflag, size = 0x4, scoped, tag = 'scoped memory for tpu_custom_call.1']
    #allocation6 [shape = 'u8[512]{0}', space=vmem, size = 0x400, scoped, tag = 'output window, operand 0, single buffered']
    %18 = vsyncpa [#allocation4], 0
    %19 = vsyncpa [#allocation5], 0
    // Predicated region
    $region2: #{tpu_custom_call.1} parent=1 // pred_check
      _
    $region3: #{tpu_custom_call.1} parent=1 // pred_check_branch
      %21 = sbr.rel (0) target = $region5
    $region4: #{tpu_custom_call.1} parent=1 // pred_region
      _
    $region5: #{tpu_custom_call.1} parent=1 // pred_fallthru
      _
    // Predicated region
    $region6: #{tpu_custom_call.1} parent=1 // pred_check
      _
    $region7: #{tpu_custom_call.1} parent=1 // pred_check_branch
      %23 = sbr.rel (0) target = $region9
    $region8: #{tpu_custom_call.1} parent=1 // pred_region
      _
    $region9: #{tpu_custom_call.1} parent=1 // pred_fallthru
      _
    // Predicated region
    $region10: #{tpu_custom_call.1} parent=1 // pred_check
      _
    $region11: #{tpu_custom_call.1} parent=1 // pred_check_branch
      %25 = sbr.rel (0) target = $region13
    $region12: #{tpu_custom_call.1} parent=1 // pred_region
      _
    $region13: #{tpu_custom_call.1} parent=1 // pred_fallthru
      _
    // Predicated region
    $region14: #{tpu_custom_call.1} parent=1 // pred_check
      _
    $region15: #{tpu_custom_call.1} parent=1 // pred_check_branch
      %27 = sbr.rel (0) target = $region17
    $region16: #{tpu_custom_call.1} parent=1 // pred_region
      _
    $region17: #{tpu_custom_call.1} parent=1 // pred_fallthru
      _
    // Predicated region
    $region18: #{tpu_custom_call.1} parent=1 // pred_check
      _
    $region19: #{tpu_custom_call.1} parent=1 // pred_check_branch
      %29 = sbr.rel (0) target = $region21
    $region20: #{tpu_custom_call.1} parent=1 // pred_region
      _
    $region21: #{tpu_custom_call.1} parent=1 // pred_fallthru
      _
    // Predicated region
    $region22: #{tpu_custom_call.1} parent=1 // pred_check
      _
    $region23: #{tpu_custom_call.1} parent=1 // pred_check_branch
      %31 = sbr.rel (0) target = $region25
    $region24: #{tpu_custom_call.1} parent=1 // pred_region
      _
    $region25: #{tpu_custom_call.1} parent=1 // pred_fallthru
      _
    // Predicated region
    $region26: #{tpu_custom_call.1} parent=1 // pred_check
      _
    $region27: #{tpu_custom_call.1} parent=1 // pred_check_branch
      %33 = sbr.rel (0) target = $region29
    $region28: #{tpu_custom_call.1} parent=1 // pred_region
      _
    $region29: #{tpu_custom_call.1} parent=1 // pred_fallthru
      _
    // Predicated region
    $region30: #{tpu_custom_call.1} parent=1 // pred_check
      _
    $region31: #{tpu_custom_call.1} parent=1 // pred_check_branch
      %35 = sbr.rel (0) target = $region33
    $region32: #{tpu_custom_call.1} parent=1 // pred_region
      %s37 = ssub.s32 3072, 3072
      %38 = vsyncadd [#allocation4], %s37
      %s39 = sshll.u32 [#allocation3], 4
      %s40 = int_to_ptr.vmem [resolvable:$true] %s39
      %45 = dma.hbm_to_vmem [thread:$0]  %s7, 3072, %s40, [#allocation4], 64, 64, 4
    $region33: #{tpu_custom_call.1} parent=1 // pred_fallthru
      _
    // Predicated region
    $region34: #{tpu_custom_call.1} parent=1 // pred_check
      _
    $region35: #{tpu_custom_call.1} parent=1 // pred_check_branch
      %47 = sbr.rel (0) target = $region37
    $region36: #{tpu_custom_call.1} parent=1 // pred_region
      _
    $region37: #{tpu_custom_call.1} parent=1 // pred_fallthru
      _
    // Predicated region
    $region38: #{tpu_custom_call.1} parent=1 // pred_check
      _
    $region39: #{tpu_custom_call.1} parent=1 // pred_check_branch
      %49 = sbr.rel (0) target = $region41
    $region40: #{tpu_custom_call.1} parent=1 // pred_region
      _
    $region41: #{tpu_custom_call.1} parent=1 // pred_fallthru
      _
    // Predicated region
    $region42: #{tpu_custom_call.1} parent=1 // pred_check
      _
    $region43: #{tpu_custom_call.1} parent=1 // pred_check_branch
      %51 = sbr.rel (0) target = $region45
    $region44: #{tpu_custom_call.1} parent=1 // pred_region
      _
    $region45: #{tpu_custom_call.1} parent=1 // pred_fallthru
      _
    // Predicated region
    $region46: #{tpu_custom_call.1} parent=1 // pred_check
      _
    $region47: #{tpu_custom_call.1} parent=1 // pred_check_branch
      %53 = sbr.rel (0) target = $region49
    $region48: #{tpu_custom_call.1} parent=1 // pred_region
      %54 = dma.done [#allocation4], 3072
    $region49: #{tpu_custom_call.1} parent=1 // pred_fallthru
      _
    %v56 = vld [vmem:[%s0] sm:$0x1]
    %v57 = vld [vmem:[%s1] sm:$0xf]
    %v58 = vld [vmem:[%s1 + $0x4] sm:$0xf]
    %v59 = vld [vmem:[%s2] sm:$0xff]
    %v60 = vld [vmem:[%s2 + $0x8] sm:$0xff]
    %v61 = vld [vmem:[%s3] sm:$0xf]
    %v62 = vld [vmem:[%s3 + $0x4] sm:$0xf]
    %v63 = vld [vmem:[%s4] sm:$0xff]
    %v64 = vld [vmem:[%s4 + $0x8] sm:$0xff]
    %v65 = vlaneseq
    %v66 = vshrl.u32 %v65, 7
    %v67 = vadd.s32 %v66, 1
    %v68 = vlaneseq
    %v69 = vand.u32 %v68, 127
    %v70 = vadd.s32 %v69, 1
    %v71 = vlaneseq
    %v72 = vshrl.u32 %v71, 7
    %v73 = vsub.s32 0, %v72
    %v74 = vrot.slane %v56, %v73
    %vm75 = vcmp.eq.s32.totalorder %v67, %v74
    %v76 = vsel %vm75, 1, 0
    %v77 = vcvt.s32.f32 %v76
    %v78 = vpack.c.bf16 %v77, %v77
    %v81 = vunpack.c.l.b16 %v57
    %v82 = vunpack.c.l.b16 %v58
    %v83 = vpack.c.b16 %v82, %v81
    %vm85 = vcmask 130048
    %v87 = vsel %vm85, %v78, 0
    %89 = vmatprep.subr.bf16.mxu0 0
    %90 = vmatpush1.bf16.msra.mxu0 0
    %91 = vmatprep.subr.bf16.mxu0 0
    %92 = vmatpush1.bf16.msra.mxu0 0
    %93 = vmatprep.subr.bf16.mxu0 0
    %94 = vmatpush1.bf16.msra.mxu0 0
    %95 = vmatprep.subr.bf16.mxu0 0
    %96 = vmatpush1.bf16.msra.mxu0 0
    %97 = vmatprep.subr.bf16.mxu0 0
    %98 = vmatpush1.bf16.msra.mxu0 0
    %99 = vmatprep.subr.bf16.mxu0 0
    %100 = vmatpush1.bf16.msra.mxu0 0
    %101 = vmatprep.subr.bf16.mxu0 0
    %102 = vmatpush1.bf16.msra.mxu0 0
    %103 = vmatprep.subr.bf16.mxu0 0
    %104 = vmatpush1.bf16.msra.mxu0 %v83
    %105 = vmatprep.subr.bf16.mxu0 0
    %106 = vmatpush2.bf16.msra.mxu0 0
    %107 = vmatprep.subr.bf16.mxu0 0
    %108 = vmatpush2.bf16.msra.mxu0 0
    %109 = vmatprep.subr.bf16.mxu0 0
    %110 = vmatpush2.bf16.msra.mxu0 0
    %111 = vmatprep.subr.bf16.mxu0 0
    %112 = vmatpush2.bf16.msra.mxu0 0
    %113 = vmatprep.subr.bf16.mxu0 0
    %114 = vmatpush2.bf16.msra.mxu0 0
    %115 = vmatprep.subr.bf16.mxu0 0
    %116 = vmatpush2.bf16.msra.mxu0 0
    %117 = vmatprep.subr.bf16.mxu0 0
    %118 = vmatpush2.bf16.msra.mxu0 0
    %119 = vmatprep.subr.bf16.mxu0 0
    %120 = vmatpush2.bf16.msra.mxu0 0
    %121 = vmatprep.mubr.bf16.mxu0 0
    %122 = vmatmul.mubr.bf16.gmra.mxu0 %v87
    %v123 = vpop.f32.mrf.mxu0
    %v124 = vadd.f32 0.0, %v123
    %v125 = vpop.f32.mrf.mxu0
    %v126 = vpop.f32.mrf.mxu0
    %v127 = vpop.f32.mrf.mxu0
    %128 = vdwg.mxu0
    %v129 = vmax.f32 %v124, 1.0
    %131 = vset.pattern.permute.xlu0 32
    %132 = vperm.xlu0 %131, %v129
    %v133 = vpop.permute.xlu0 %132
    %v135 = vrcp.pop %v133
    %v136 = vmul.f32 %v124, %v135
    %v137 = vpack.c.bf16 %v136, %v136
    %138 = vset.pattern.permute.xlu0 0
    %139 = vperm.xlu0 %138, %v59
    %v140 = vpop.permute.xlu0 %139
    %141 = vset.pattern.permute.xlu0 0
    %142 = vperm.xlu0 %141, %v60
    %v143 = vpop.permute.xlu0 %142
    %vm144 = vcmp.eq.s32.totalorder %v140, %v70
    %vm145 = vcmp.eq.s32.totalorder %v143, %v70
    %v146 = vsel %vm144, 1, 0
    %v147 = vsel %vm145, 1, 0
    %v148 = vcvt.s32.f32 %v146
    %v149 = vcvt.s32.f32 %v147
    %v150 = vpack.c.bf16 %v149, %v148
    %vm151 = vcmask 64512
    %v153 = vsel %vm151, %v150, 0
    %vm155 = vcmask 1043456
    %v157 = vsel %vm155, %v137, 0
    %159 = vmatprep.subr.bf16.mxu0 0
    %160 = vmatpush1.bf16.msra.mxu0 0
    %161 = vmatprep.subr.bf16.mxu0 0
    %162 = vmatpush1.bf16.msra.mxu0 0
    %163 = vmatprep.subr.bf16.mxu0 0
    %164 = vmatpush1.bf16.msra.mxu0 0
    %165 = vmatprep.subr.bf16.mxu0 0
    %166 = vmatpush1.bf16.msra.mxu0 0
    %167 = vmatprep.subr.bf16.mxu0 0
    %168 = vmatpush1.bf16.msra.mxu0 0
    %169 = vmatprep.subr.bf16.mxu0 0
    %170 = vmatpush1.bf16.msra.mxu0 0
    %171 = vmatprep.subr.bf16.mxu0 0
    %172 = vmatpush1.bf16.msra.mxu0 0
    %173 = vmatprep.subr.bf16.mxu0 0
    %174 = vmatpush1.bf16.msra.mxu0 %v157
    %175 = vmatprep.subr.bf16.mxu0 0
    %176 = vmatpush2.bf16.msra.mxu0 0
    %177 = vmatprep.subr.bf16.mxu0 0
    %178 = vmatpush2.bf16.msra.mxu0 0
    %179 = vmatprep.subr.bf16.mxu0 0
    %180 = vmatpush2.bf16.msra.mxu0 0
    %181 = vmatprep.subr.bf16.mxu0 0
    %182 = vmatpush2.bf16.msra.mxu0 0
    %183 = vmatprep.subr.bf16.mxu0 0
    %184 = vmatpush2.bf16.msra.mxu0 0
    %185 = vmatprep.subr.bf16.mxu0 0
    %186 = vmatpush2.bf16.msra.mxu0 0
    %187 = vmatprep.subr.bf16.mxu0 0
    %188 = vmatpush2.bf16.msra.mxu0 0
    %189 = vmatprep.subr.bf16.mxu0 0
    %190 = vmatpush2.bf16.msra.mxu0 0
    %191 = vmatprep.mubr.bf16.mxu0 0
    %192 = vmatmul.mubr.bf16.gmra.mxu0 %v153
    %v193 = vpop.f32.mrf.mxu0
    %v194 = vadd.f32 0.0, %v193
    %v195 = vpop.f32.mrf.mxu0
    %v196 = vpop.f32.mrf.mxu0
    %v197 = vadd.f32 0.0, %v196
    %v198 = vpop.f32.mrf.mxu0
    %199 = vdwg.mxu0
    %v200 = vunpack.c.l.bf16 %v61
    %v201 = vunpack.c.l.bf16 %v62
    %v202 = vadd.f32 %v200, %v194
    %v203 = vadd.f32 %v201, %v197
    %205 = vset.pattern.permute.xlu0 0
    %206 = vperm.xlu0 %205, %v63
    %v207 = vpop.permute.xlu0 %206
    %210 = vset.pattern.permute.xlu0 0
    %211 = vperm.xlu0 %210, %v64
    %v212 = vpop.permute.xlu0 %211
    %v214 = vmul.f32 %v202, %v207
    %v215 = vmul.f32 %v203, %v212
    %v216 = vadd.s32 %v66, 8
    %vm217 = vcmp.eq.s32.totalorder %v66, 0
    %vm218 = vcmp.eq.s32.totalorder %v216, 0
    %vm219 = vcmp.eq.s32.totalorder %v66, 7
    %vm220 = vcmp.eq.s32.totalorder %v216, 7
    %vm221 = vcmp.eq.s32.totalorder %v66, 8
    %vm222 = vcmp.eq.s32.totalorder %v216, 8
    %vm223 = vmor %vm217, %vm221
    %vm224 = vmor %vm218, %vm222
    %vm225 = vcmp.eq.s32.totalorder %v66, 15
    %vm226 = vcmp.eq.s32.totalorder %v216, 15
    %vm227 = vmor %vm219, %vm225
    %vm228 = vmor %vm220, %vm226
    %vm229 = vmxor %vm223, 1
    %vm230 = vmxor %vm224, 1
    %v231 = vsel %vm229, 1, 0
    %v232 = vsel %vm230, 1, 0
    %v233 = vcvt.s32.f32 %v231
    %v234 = vcvt.s32.f32 %v232
    %vm235 = vmxor %vm227, 1
    %vm236 = vmxor %vm228, 1
    %v237 = vsel %vm235, 1, 0
    %v238 = vsel %vm236, 1, 0
    %v239 = vcvt.s32.f32 %v237
    %v240 = vcvt.s32.f32 %v238
    %v241 = vld [vmem:[%s6] sm:$0x7]
    %v242 = vld [vmem:[%s8] sm:$0x7]
    %v243 = vrot.slane %v214, 7
    %v244 = vrot.slane %v215, 7
    %vm245 = vcmp.lt.s32.totalorder %v66, 1
    %v246 = vsel %vm245, %v243, %v244
    %v247 = vsel %vm245, %v244, %v243
    %v248 = vmul.f32 %v247, %v233
    %v249 = vmul.f32 %v246, %v234
    %v250 = vpack.c.bf16 %v249, %v248
    %v251 = vrot.slane %v214, 1
    %v252 = vrot.slane %v215, 1
    %vm253 = vcmp.lt.s32.totalorder %v66, 7
    %v254 = vsel %vm253, %v251, %v252
    %v255 = vsel %vm253, %v252, %v251
    %v256 = vmul.f32 %v254, %v239
    %v257 = vmul.f32 %v255, %v240
    %v258 = vpack.c.bf16 %v257, %v256
    %v259 = vpack.c.bf16 %v215, %v214
    %261 = vrot.lane.b32.xlu0 %v259, 32
    %v262 = vpop.permute.xlu0 %261
    %264 = vrot.lane.b32.xlu0 %v258, 64
    %v265 = vpop.permute.xlu0 %264
    %vm266 = vcmask 261120
    %v269 = vsel %vm266, %v250, %v262
    %vm270 = vcmask 523264
    %v272 = vsel %vm270, %v269, %v265
    %v273 = vld [vmem:[%s5] sm:$0xf]
    %v274 = vld [vmem:[%s5 + $0x4] sm:$0xf]
    %v275 = vld [vmem:[%s5 + $0x8] sm:$0xf]
    %v276 = vld [vmem:[%s5 + $0xc] sm:$0xf]
    %v277 = vld [vmem:[%s5 + $0x10] sm:$0xf]
    %v278 = vld [vmem:[%s5 + $0x14] sm:$0xf]
    %v279 = vld [vmem:[%s5 + $0x18] sm:$0xf]
    %v280 = vld [vmem:[%s5 + $0x1c] sm:$0xf]
    %v281 = vld [vmem:[%s5 + $0x20] sm:$0xf]
    %v282 = vld [vmem:[%s5 + $0x24] sm:$0xf]
    %v283 = vld [vmem:[%s5 + $0x28] sm:$0xf]
    %v284 = vld [vmem:[%s5 + $0x2c] sm:$0xf]
    %v285 = vlaneseq
    %v286 = vshrl.u32 %v285, 7
    %v287 = vsub.s32 0, %v286
    %v288 = vrot.slane %v241, %v287
    %v301 = vunpack.c.l.b16 %v273
    %v302 = vunpack.c.l.b16 %v274
    %v303 = vunpack.c.l.b16 %v275
    %v304 = vunpack.c.l.b16 %v276
    %v305 = vunpack.c.l.b16 %v277
    %v306 = vunpack.c.l.b16 %v278
    %v307 = vunpack.c.l.b16 %v279
    %v308 = vunpack.c.l.b16 %v280
    %v309 = vunpack.c.l.b16 %v281
    %v310 = vunpack.c.l.b16 %v282
    %v311 = vunpack.c.l.b16 %v283
    %v312 = vunpack.c.l.b16 %v284
    %v313 = vpack.c.b16 %v302, %v301
    %v314 = vpack.c.b16 %v304, %v303
    %v315 = vpack.c.b16 %v306, %v305
    %v316 = vpack.c.b16 %v308, %v307
    %v317 = vpack.c.b16 %v310, %v309
    %v318 = vpack.c.b16 %v312, %v311
    %vm325 = vcmask 785408
    %v326 = vsel %vm325, %v272, 0
    %328 = vmatprep.subr.bf16.mxu0 0
    %329 = vmatpush1.bf16.msra.mxu0 0
    %330 = vmatprep.subr.bf16.mxu0 0
    %331 = vmatpush1.bf16.msra.mxu0 0
    %332 = vmatprep.subr.bf16.mxu0 0
    %333 = vmatpush1.bf16.msra.mxu0 %v318
    %334 = vmatprep.subr.bf16.mxu0 0
    %335 = vmatpush1.bf16.msra.mxu0 %v317
    %336 = vmatprep.subr.bf16.mxu0 0
    %337 = vmatpush1.bf16.msra.mxu0 %v316
    %338 = vmatprep.subr.bf16.mxu0 0
    %339 = vmatpush1.bf16.msra.mxu0 %v315
    %340 = vmatprep.subr.bf16.mxu0 0
    %341 = vmatpush1.bf16.msra.mxu0 %v314
    %342 = vmatprep.subr.bf16.mxu0 0
    %343 = vmatpush1.bf16.msra.mxu0 %v313
    %344 = vmatprep.subr.bf16.mxu0 0
    %345 = vmatpush2.bf16.msra.mxu0 0
    %346 = vmatprep.subr.bf16.mxu0 0
    %347 = vmatpush2.bf16.msra.mxu0 0
    %348 = vmatprep.subr.bf16.mxu0 0
    %349 = vmatpush2.bf16.msra.mxu0 0
    %350 = vmatprep.subr.bf16.mxu0 0
    %351 = vmatpush2.bf16.msra.mxu0 0
    %352 = vmatprep.subr.bf16.mxu0 0
    %353 = vmatpush2.bf16.msra.mxu0 0
    %354 = vmatprep.subr.bf16.mxu0 0
    %355 = vmatpush2.bf16.msra.mxu0 0
    %356 = vmatprep.subr.bf16.mxu0 0
    %357 = vmatpush2.bf16.msra.mxu0 0
    %358 = vmatprep.subr.bf16.mxu0 0
    %359 = vmatpush2.bf16.msra.mxu0 0
    %360 = vmatprep.mubr.bf16.mxu0 0
    %361 = vmatmul.mubr.bf16.gmra.mxu0 %v326
    %v362 = vpop.f32.mrf.mxu0
    %v363 = vadd.f32 %v288, %v362
    %v364 = vpop.f32.mrf.mxu0
    %v365 = vpop.f32.mrf.mxu0
    %v366 = vadd.f32 %v288, %v365
    %v367 = vpop.f32.mrf.mxu0
    %368 = vdwg.mxu0
    %v369 = vmax.f32 %v363, 0.0
    %v370 = vmax.f32 %v366, 0.0
    %371 = vadd.xlane.f32.xlu0 %v369
    %v372 = vpop.xlane.xlu0 %371
    %373 = vadd.xlane.f32.xlu0 %v370
    %v374 = vpop.xlane.xlu0 %373
    %v375 = vrcp.pop 128.0
    %v376 = vmul.f32 %v372, %v375
    %v377 = vmul.f32 %v374, %v375
    %v378 = vsub.f32 %v369, %v376
    %v379 = vsub.f32 %v370, %v377
    %v380 = vmul.f32 %v378, %v378
    %v381 = vmul.f32 %v379, %v379
    %382 = vadd.xlane.f32.xlu0 %v380
    %v383 = vpop.xlane.xlu0 %382
    %384 = vadd.xlane.f32.xlu0 %v381
    %v385 = vpop.xlane.xlu0 %384
    %v386 = vmul.f32 %v383, %v375
    %v387 = vmul.f32 %v385, %v375
    %v388 = vadd.f32 %v386, 1e-05
    %v389 = vadd.f32 %v387, 1e-05
    %v390 = vrsqrt.pop %v388
    %v391 = vrsqrt.pop %v389
    %v392 = vmul.f32 %v378, %v390
    %v393 = vmul.f32 %v379, %v391
    %v394 = vlaneseq
    %v395 = vshrl.u32 %v394, 7
    %v396 = vsub.s32 1, %v395
    %v397 = vrot.slane %v241, %v396
    %v398 = vmul.f32 %v392, %v397
    %v399 = vmul.f32 %v393, %v397
    %v400 = vlaneseq
    %v401 = vshrl.u32 %v400, 7
    %v402 = vsub.s32 2, %v401
    %v403 = vrot.slane %v241, %v402
    %v404 = vadd.f32 %v398, %v403
    %v405 = vadd.f32 %v399, %v403
    %v406 = vmul.f32 %v404, %v207
    %v407 = vmul.f32 %v405, %v212
    %v408 = vrot.slane %v406, 7
    %v409 = vrot.slane %v407, 7
    %v410 = vsel %vm245, %v408, %v409
    %v411 = vsel %vm245, %v409, %v408
    %v412 = vmul.f32 %v411, %v233
    %v413 = vmul.f32 %v410, %v234
    %v414 = vpack.c.bf16 %v413, %v412
    %v415 = vrot.slane %v406, 1
    %v416 = vrot.slane %v407, 1
    %v417 = vsel %vm253, %v415, %v416
    %v418 = vsel %vm253, %v416, %v415
    %v419 = vmul.f32 %v417, %v239
    %v420 = vmul.f32 %v418, %v240
    %v421 = vpack.c.bf16 %v420, %v419
    %v422 = vpack.c.bf16 %v407, %v406
    %v423 = vld [vmem:[#allocation3] sm:$0xf]
    %v424 = vld [vmem:[#allocation3 + $0x4] sm:$0xf]
    %v425 = vld [vmem:[#allocation3 + $0x8] sm:$0xf]
    %v426 = vld [vmem:[#allocation3 + $0xc] sm:$0xf]
    %v427 = vld [vmem:[#allocation3 + $0x10] sm:$0xf]
    %v428 = vld [vmem:[#allocation3 + $0x14] sm:$0xf]
    %v429 = vld [vmem:[#allocation3 + $0x18] sm:$0xf]
    %v430 = vld [vmem:[#allocation3 + $0x1c] sm:$0xf]
    %v431 = vld [vmem:[#allocation3 + $0x20] sm:$0xf]
    %v432 = vld [vmem:[#allocation3 + $0x24] sm:$0xf]
    %v433 = vld [vmem:[#allocation3 + $0x28] sm:$0xf]
    %v434 = vld [vmem:[#allocation3 + $0x2c] sm:$0xf]
    %v435 = vld [vmem:[#allocation3 + $0x30] sm:$0xf]
    %v436 = vld [vmem:[#allocation3 + $0x34] sm:$0xf]
    %v437 = vld [vmem:[#allocation3 + $0x38] sm:$0xf]
    %v438 = vld [vmem:[#allocation3 + $0x3c] sm:$0xf]
    %v439 = vld [vmem:[#allocation3 + $0x40] sm:$0xf]
    %v440 = vld [vmem:[#allocation3 + $0x44] sm:$0xf]
    %v441 = vld [vmem:[#allocation3 + $0x48] sm:$0xf]
    %v442 = vld [vmem:[#allocation3 + $0x4c] sm:$0xf]
    %v443 = vld [vmem:[#allocation3 + $0x50] sm:$0xf]
    %v444 = vld [vmem:[#allocation3 + $0x54] sm:$0xf]
    %v445 = vld [vmem:[#allocation3 + $0x58] sm:$0xf]
    %v446 = vld [vmem:[#allocation3 + $0x5c] sm:$0xf]
    %v447 = vld [vmem:[#allocation3 + $0x60] sm:$0xf]
    %v448 = vld [vmem:[#allocation3 + $0x64] sm:$0xf]
    %v449 = vld [vmem:[#allocation3 + $0x68] sm:$0xf]
    %v450 = vld [vmem:[#allocation3 + $0x6c] sm:$0xf]
    %v451 = vld [vmem:[#allocation3 + $0x70] sm:$0xf]
    %v452 = vld [vmem:[#allocation3 + $0x74] sm:$0xf]
    %v453 = vld [vmem:[#allocation3 + $0x78] sm:$0xf]
    %v454 = vld [vmem:[#allocation3 + $0x7c] sm:$0xf]
    %v455 = vld [vmem:[#allocation3 + $0x80] sm:$0xf]
    %v456 = vld [vmem:[#allocation3 + $0x84] sm:$0xf]
    %v457 = vld [vmem:[#allocation3 + $0x88] sm:$0xf]
    %v458 = vld [vmem:[#allocation3 + $0x8c] sm:$0xf]
    %v459 = vld [vmem:[#allocation3 + $0x90] sm:$0xf]
    %v460 = vld [vmem:[#allocation3 + $0x94] sm:$0xf]
    %v461 = vld [vmem:[#allocation3 + $0x98] sm:$0xf]
    %v462 = vld [vmem:[#allocation3 + $0x9c] sm:$0xf]
    %v463 = vld [vmem:[#allocation3 + $0xa0] sm:$0xf]
    %v464 = vld [vmem:[#allocation3 + $0xa4] sm:$0xf]
    %v465 = vld [vmem:[#allocation3 + $0xa8] sm:$0xf]
    %v466 = vld [vmem:[#allocation3 + $0xac] sm:$0xf]
    %v467 = vld [vmem:[#allocation3 + $0xb0] sm:$0xf]
    %v468 = vld [vmem:[#allocation3 + $0xb4] sm:$0xf]
    %v469 = vld [vmem:[#allocation3 + $0xb8] sm:$0xf]
    %v470 = vld [vmem:[#allocation3 + $0xbc] sm:$0xf]
    %v471 = vlaneseq
    %v472 = vshrl.u32 %v471, 7
    %v473 = vsub.s32 0, %v472
    %v474 = vrot.slane %v242, %v473
    %v523 = vunpack.c.l.b16 %v423
    %v524 = vunpack.c.l.b16 %v424
    %v525 = vunpack.c.l.b16 %v425
    %v526 = vunpack.c.l.b16 %v426
    %v527 = vunpack.c.l.b16 %v427
    %v528 = vunpack.c.l.b16 %v428
    %v529 = vunpack.c.l.b16 %v429
    %v530 = vunpack.c.l.b16 %v430
    %v531 = vunpack.c.l.b16 %v431
    %v532 = vunpack.c.l.b16 %v432
    %v533 = vunpack.c.l.b16 %v433
    %v534 = vunpack.c.l.b16 %v434
    %v535 = vunpack.c.l.b16 %v435
    %v536 = vunpack.c.l.b16 %v436
    %v537 = vunpack.c.l.b16 %v437
    %v538 = vunpack.c.l.b16 %v438
    %v539 = vunpack.c.l.b16 %v439
    %v540 = vunpack.c.l.b16 %v440
    %v541 = vunpack.c.l.b16 %v441
    %v542 = vunpack.c.l.b16 %v442
    %v543 = vunpack.c.l.b16 %v443
    %v544 = vunpack.c.l.b16 %v444
    %v545 = vunpack.c.l.b16 %v445
    %v546 = vunpack.c.l.b16 %v446
    %v547 = vunpack.c.l.b16 %v447
    %v548 = vunpack.c.l.b16 %v448
    %v549 = vunpack.c.l.b16 %v449
    %v550 = vunpack.c.l.b16 %v450
    %v551 = vunpack.c.l.b16 %v451
    %v552 = vunpack.c.l.b16 %v452
    %v553 = vunpack.c.l.b16 %v453
    %v554 = vunpack.c.l.b16 %v454
    %v555 = vunpack.c.l.b16 %v455
    %v556 = vunpack.c.l.b16 %v456
    %v557 = vunpack.c.l.b16 %v457
    %v558 = vunpack.c.l.b16 %v458
    %v559 = vunpack.c.l.b16 %v459
    %v560 = vunpack.c.l.b16 %v460
    %v561 = vunpack.c.l.b16 %v461
    %v562 = vunpack.c.l.b16 %v462
    %v563 = vunpack.c.l.b16 %v463
    %v564 = vunpack.c.l.b16 %v464
    %v565 = vunpack.c.l.b16 %v465
    %v566 = vunpack.c.l.b16 %v466
    %v567 = vunpack.c.l.b16 %v467
    %v568 = vunpack.c.l.b16 %v468
    %v569 = vunpack.c.l.b16 %v469
    %v570 = vunpack.c.l.b16 %v470
    %v571 = vpack.c.b16 %v524, %v523
    %v572 = vpack.c.b16 %v526, %v525
    %v573 = vpack.c.b16 %v528, %v527
    %v574 = vpack.c.b16 %v530, %v529
    %v575 = vpack.c.b16 %v532, %v531
    %v576 = vpack.c.b16 %v534, %v533
    %v577 = vpack.c.b16 %v536, %v535
    %v578 = vpack.c.b16 %v538, %v537
    %v579 = vpack.c.b16 %v540, %v539
    %v580 = vpack.c.b16 %v542, %v541
    %v581 = vpack.c.b16 %v544, %v543
    %v582 = vpack.c.b16 %v546, %v545
    %v583 = vpack.c.b16 %v548, %v547
    %v584 = vpack.c.b16 %v550, %v549
    %v585 = vpack.c.b16 %v552, %v551
    %v586 = vpack.c.b16 %v554, %v553
    %v587 = vpack.c.b16 %v556, %v555
    %v588 = vpack.c.b16 %v558, %v557
    %v589 = vpack.c.b16 %v560, %v559
    %v590 = vpack.c.b16 %v562, %v561
    %v591 = vpack.c.b16 %v564, %v563
    %v592 = vpack.c.b16 %v566, %v565
    %v593 = vpack.c.b16 %v568, %v567
    %v594 = vpack.c.b16 %v570, %v569
    %619 = vmatprep.subr.bf16.mxu0 0
    %620 = vmatpush1.bf16.msra.mxu0 %v578
    %621 = vmatprep.subr.bf16.mxu0 0
    %622 = vmatpush1.bf16.msra.mxu0 %v577
    %623 = vmatprep.subr.bf16.mxu0 0
    %624 = vmatpush1.bf16.msra.mxu0 %v576
    %625 = vmatprep.subr.bf16.mxu0 0
    %626 = vmatpush1.bf16.msra.mxu0 %v575
    %627 = vmatprep.subr.bf16.mxu0 0
    %628 = vmatpush1.bf16.msra.mxu0 %v574
    %629 = vmatprep.subr.bf16.mxu0 0
    %630 = vmatpush1.bf16.msra.mxu0 %v573
    %631 = vmatprep.subr.bf16.mxu0 0
    %632 = vmatpush1.bf16.msra.mxu0 %v572
    %633 = vmatprep.subr.bf16.mxu0 0
    %634 = vmatpush1.bf16.msra.mxu0 %v571
    %635 = vmatprep.subr.bf16.mxu0 0
    %636 = vmatpush2.bf16.msra.mxu0 %v586
    %637 = vmatprep.subr.bf16.mxu0 0
    %638 = vmatpush2.bf16.msra.mxu0 %v585
    %639 = vmatprep.subr.bf16.mxu0 0
    %640 = vmatpush2.bf16.msra.mxu0 %v584
    %641 = vmatprep.subr.bf16.mxu0 0
    %642 = vmatpush2.bf16.msra.mxu0 %v583
    %643 = vmatprep.subr.bf16.mxu0 0
    %644 = vmatpush2.bf16.msra.mxu0 %v582
    %645 = vmatprep.subr.bf16.mxu0 0
    %646 = vmatpush2.bf16.msra.mxu0 %v581
    %647 = vmatprep.subr.bf16.mxu0 0
    %648 = vmatpush2.bf16.msra.mxu0 %v580
    %649 = vmatprep.subr.bf16.mxu0 0
    %650 = vmatpush2.bf16.msra.mxu0 %v579
    %651 = vmatprep.mubr.bf16.mxu0 %v422
    %652 = vmatmul.mubr.bf16.gmra.mxu0 %v414
    %v653 = vpop.f32.mrf.mxu0
    %v654 = vadd.f32 %v474, %v653
    %v655 = vpop.f32.mrf.mxu0
    %v656 = vpop.f32.mrf.mxu0
    %v657 = vadd.f32 %v474, %v656
    %v658 = vpop.f32.mrf.mxu0
    %659 = vdwg.mxu0
    %660 = vmatprep.subr.bf16.mxu0 0
    %661 = vmatpush1.bf16.msra.mxu0 %v594
    %662 = vmatprep.subr.bf16.mxu0 0
    %663 = vmatpush1.bf16.msra.mxu0 %v593
    %664 = vmatprep.subr.bf16.mxu0 0
    %665 = vmatpush1.bf16.msra.mxu0 %v592
    %666 = vmatprep.subr.bf16.mxu0 0
    %667 = vmatpush1.bf16.msra.mxu0 %v591
    %668 = vmatprep.subr.bf16.mxu0 0
    %669 = vmatpush1.bf16.msra.mxu0 %v590
    %670 = vmatprep.subr.bf16.mxu0 0
    %671 = vmatpush1.bf16.msra.mxu0 %v589
    %672 = vmatprep.subr.bf16.mxu0 0
    %673 = vmatpush1.bf16.msra.mxu0 %v588
    %674 = vmatprep.subr.bf16.mxu0 0
    %675 = vmatpush1.bf16.msra.mxu0 %v587
    %676 = vmatprep.subr.bf16.mxu0 0
    %677 = vmatpush2.bf16.msra.mxu0 0
    %678 = vmatprep.subr.bf16.mxu0 0
    %679 = vmatpush2.bf16.msra.mxu0 0
    %680 = vmatprep.subr.bf16.mxu0 0
    %681 = vmatpush2.bf16.msra.mxu0 0
    %682 = vmatprep.subr.bf16.mxu0 0
    %683 = vmatpush2.bf16.msra.mxu0 0
    %684 = vmatprep.subr.bf16.mxu0 0
    %685 = vmatpush2.bf16.msra.mxu0 0
    %686 = vmatprep.subr.bf16.mxu0 0
    %687 = vmatpush2.bf16.msra.mxu0 0
    %688 = vmatprep.subr.bf16.mxu0 0
    %689 = vmatpush2.bf16.msra.mxu0 0
    %690 = vmatprep.subr.bf16.mxu0 0
    %691 = vmatpush2.bf16.msra.mxu0 0
    %692 = vmatprep.mubr.bf16.mxu0 0
    %693 = vmatmul.mubr.bf16.gmra.mxu0 %v421
    %v694 = vpop.f32.mrf.mxu0
    %v695 = vadd.f32 %v654, %v694
    %v696 = vpop.f32.mrf.mxu0
    %v697 = vpop.f32.mrf.mxu0
    %v698 = vadd.f32 %v657, %v697
    %v699 = vpop.f32.mrf.mxu0
    %700 = vdwg.mxu0
    %v701 = vmax.f32 %v695, 0.0
    %v702 = vmax.f32 %v698, 0.0
    %703 = vadd.xlane.f32.xlu0 %v701
    %v704 = vpop.xlane.xlu0 %703
    %705 = vadd.xlane.f32.xlu0 %v702
    %v706 = vpop.xlane.xlu0 %705
    %v707 = vmul.f32 %v704, %v375
    %v708 = vmul.f32 %v706, %v375
    %v709 = vsub.f32 %v701, %v707
    %v710 = vsub.f32 %v702, %v708
    %v711 = vmul.f32 %v709, %v709
    %v712 = vmul.f32 %v710, %v710
    %713 = vadd.xlane.f32.xlu0 %v711
    %v714 = vpop.xlane.xlu0 %713
    %715 = vadd.xlane.f32.xlu0 %v712
    %v716 = vpop.xlane.xlu0 %715
    %v717 = vmul.f32 %v714, %v375
    %v718 = vmul.f32 %v716, %v375
    %v719 = vadd.f32 %v717, 1e-05
    %v720 = vadd.f32 %v718, 1e-05
    %v721 = vrsqrt.pop %v719
    %v722 = vrsqrt.pop %v720
    %v723 = vmul.f32 %v709, %v721
    %v724 = vmul.f32 %v710, %v722
    %v725 = vlaneseq
    %v726 = vshrl.u32 %v725, 7
    %v727 = vsub.s32 1, %v726
    %v728 = vrot.slane %v242, %v727
    %v729 = vmul.f32 %v723, %v728
    %v730 = vmul.f32 %v724, %v728
    %v731 = vlaneseq
    %v732 = vshrl.u32 %v731, 7
    %v733 = vsub.s32 2, %v732
    %v734 = vrot.slane %v242, %v733
    %v735 = vadd.f32 %v729, %v734
    %v736 = vadd.f32 %v730, %v734
    %v737 = vmul.f32 %v735, %v207
    %v738 = vmul.f32 %v736, %v212
    %v739 = vpack.c.bf16 %v738, %v737
    %v740 = vld [vmem:[%s9] sm:$0xf]
    %v741 = vld [vmem:[%s9 + $0x4] sm:$0xf]
    %v742 = vld [vmem:[%s9 + $0x8] sm:$0xf]
    %v743 = vld [vmem:[%s9 + $0xc] sm:$0xf]
    %v744 = vld [vmem:[%s9 + $0x10] sm:$0xf]
    %v745 = vld [vmem:[%s9 + $0x14] sm:$0xf]
    %v746 = vld [vmem:[%s9 + $0x18] sm:$0xf]
    %v747 = vld [vmem:[%s9 + $0x1c] sm:$0xf]
    %v748 = vld [vmem:[%s9 + $0x20] sm:$0xf]
    %v749 = vld [vmem:[%s9 + $0x24] sm:$0xf]
    %v750 = vld [vmem:[%s9 + $0x28] sm:$0xf]
    %v751 = vld [vmem:[%s9 + $0x2c] sm:$0xf]
    %v752 = vld [vmem:[%s9 + $0x30] sm:$0xf]
    %v753 = vld [vmem:[%s9 + $0x34] sm:$0xf]
    %v754 = vld [vmem:[%s9 + $0x38] sm:$0xf]
    %v755 = vld [vmem:[%s9 + $0x3c] sm:$0xf]
    %v756 = vld [vmem:[#allocation2] sm:$0x1]
    %v758 = vlaneseq
    %v759 = vshrl.u32 %v758, 7
    %v760 = vsub.s32 0, %v759
    %v761 = vrot.slane %v756, %v760
    %v779 = vunpack.c.l.b16 %v740
    %v780 = vunpack.c.l.b16 %v741
    %v781 = vunpack.c.l.b16 %v742
    %v782 = vunpack.c.l.b16 %v743
    %v783 = vunpack.c.l.b16 %v744
    %v784 = vunpack.c.l.b16 %v745
    %v785 = vunpack.c.l.b16 %v746
    %v786 = vunpack.c.l.b16 %v747
    %v787 = vunpack.c.l.b16 %v748
    %v788 = vunpack.c.l.b16 %v749
    %v789 = vunpack.c.l.b16 %v750
    %v790 = vunpack.c.l.b16 %v751
    %v791 = vunpack.c.l.b16 %v752
    %v792 = vunpack.c.l.b16 %v753
    %v793 = vunpack.c.l.b16 %v754
    %v794 = vunpack.c.l.b16 %v755
    %v795 = vpack.c.b16 %v780, %v779
    %v796 = vpack.c.b16 %v782, %v781
    %v797 = vpack.c.b16 %v784, %v783
    %v798 = vpack.c.b16 %v786, %v785
    %v799 = vpack.c.b16 %v788, %v787
    %v800 = vpack.c.b16 %v790, %v789
    %v801 = vpack.c.b16 %v792, %v791
    %v802 = vpack.c.b16 %v794, %v793
    %811 = vmatprep.subr.bf16.mxu0 0
    %812 = vmatpush1.bf16.msra.mxu0 %v802
    %813 = vmatprep.subr.bf16.mxu0 0
    %814 = vmatpush1.bf16.msra.mxu0 %v801
    %815 = vmatprep.subr.bf16.mxu0 0
    %816 = vmatpush1.bf16.msra.mxu0 %v800
    %817 = vmatprep.subr.bf16.mxu0 0
    %818 = vmatpush1.bf16.msra.mxu0 %v799
    %819 = vmatprep.subr.bf16.mxu0 0
    %820 = vmatpush1.bf16.msra.mxu0 %v798
    %821 = vmatprep.subr.bf16.mxu0 0
    %822 = vmatpush1.bf16.msra.mxu0 %v797
    %823 = vmatprep.subr.bf16.mxu0 0
    %824 = vmatpush1.bf16.msra.mxu0 %v796
    %825 = vmatprep.subr.bf16.mxu0 0
    %826 = vmatpush1.bf16.msra.mxu0 %v795
    %827 = vmatprep.subr.bf16.mxu0 0
    %828 = vmatpush2.bf16.msra.mxu0 0
    %829 = vmatprep.subr.bf16.mxu0 0
    %830 = vmatpush2.bf16.msra.mxu0 0
    %831 = vmatprep.subr.bf16.mxu0 0
    %832 = vmatpush2.bf16.msra.mxu0 0
    %833 = vmatprep.subr.bf16.mxu0 0
    %834 = vmatpush2.bf16.msra.mxu0 0
    %835 = vmatprep.subr.bf16.mxu0 0
    %836 = vmatpush2.bf16.msra.mxu0 0
    %837 = vmatprep.subr.bf16.mxu0 0
    %838 = vmatpush2.bf16.msra.mxu0 0
    %839 = vmatprep.subr.bf16.mxu0 0
    %840 = vmatpush2.bf16.msra.mxu0 0
    %841 = vmatprep.subr.bf16.mxu0 0
    %842 = vmatpush2.bf16.msra.mxu0 0
    %843 = vmatprep.mubr.bf16.mxu0 0
    %844 = vmatmul.mubr.bf16.gmra.mxu0 %v739
    %v845 = vpop.f32.mrf.mxu0
    %v846 = vadd.f32 %v761, %v845
    %v847 = vpop.f32.mrf.mxu0
    %v848 = vpop.f32.mrf.mxu0
    %v849 = vadd.f32 %v761, %v848
    %v850 = vpop.f32.mrf.mxu0
    %851 = vdwg.mxu0
    %v852 = vmax.f32 %v846, 0.0
    %v853 = vmax.f32 %v849, 0.0
    %v854 = vand.u32 2147483647, %v846
    %v855 = vand.u32 2147483647, %v849
    %v856 = vsub.f32 0.0, %v854
    %v857 = vsub.f32 0.0, %v855
    %v858 = vmul.f32 %v856, 1.442695
    %v859 = vpow.pop %v858
    %v860 = vmul.f32 %v857, 1.442695
    %v861 = vpow.pop %v860
    %v862 = vadd.f32 %v859, 1.0
    %v863 = vadd.f32 %v861, 1.0
    %v864 = vlog2.pop %v862
    %v865 = vmul.f32 %v864, 0.6931472
    %v866 = vlog2.pop %v863
    %v867 = vmul.f32 %v866, 0.6931472
    %v868 = vadd.f32 %v852, %v865
    %v869 = vadd.f32 %v853, %v867
    %v870 = vadd.f32 %v868, 1.0
    %v871 = vadd.f32 %v869, 1.0
    %v872 = vmul.f32 %v870, %v63
    %v873 = vmul.f32 %v871, %v64
    %v874 = vunpack.c.l.bf16 %v150
    %v875 = vunpack.c.h.bf16 %v150
    %877 = vset.pattern.permute.xlu0 0
    %878 = vperm.xlu0 %877, %v872
    %v879 = vpop.permute.xlu0 %878
    %882 = vset.pattern.permute.xlu0 0
    %883 = vperm.xlu0 %882, %v873
    %v884 = vpop.permute.xlu0 %883
    %v886 = vmul.f32 %v879, %v874
    %v887 = vmul.f32 %v884, %v875
    %v888 = vsel %vm151, %v886, 0.0
    %v889 = vsel %vm151, %v887, 0.0
    %v890 = vadd.f32 %v888, %v889
    %v891 = vrot.slane %v890, 4
    %v892 = vadd.f32 %v890, %v891
    %v893 = vrot.slane %v892, 2
    %v894 = vadd.f32 %v892, %v893
    %v895 = vrot.slane %v894, 1
    %v896 = vadd.f32 %v894, %v895
    %vm897 = vcmask 57344
    %898 = vst.msk [vmem:[#allocation6] sm:$0x1] %vm897, %v896
    // Predicated region
    $region50: #{tpu_custom_call.1} parent=1 // pred_check
      _
    $region51: #{tpu_custom_call.1} parent=1 // pred_check_branch
      %900 = sbr.rel (0) target = $region53
    $region52: #{tpu_custom_call.1} parent=1 // pred_region
      %s902 = ssub.s32 16, 16
      %903 = vsyncadd [#allocation5], %s902
      %s905 = sshll.u32 [#allocation6], 4
      %s906 = int_to_ptr.vmem [resolvable:$true] %s905
      %908 = dma.vmem_to_hbm [thread:$0]  %s906, 16, %s11, [#allocation5]
    $region53: #{tpu_custom_call.1} parent=1 // pred_fallthru
      _
    // Predicated region
    $region54: #{tpu_custom_call.1} parent=1 // pred_check
      _
    $region55: #{tpu_custom_call.1} parent=1 // pred_check_branch
      %910 = sbr.rel (0) target = $region57
    $region56: #{tpu_custom_call.1} parent=1 // pred_region
      %911 = dma.done [#allocation5], 16
    $region57: #{tpu_custom_call.1} parent=1 // pred_fallthru
      _
    %912 = vsyncpa [#allocation4], 1
    %913 = vsyncpa [#allocation5], 1

</llo_original>
